<compile_context>
chip_gen: v6e
topology: v6e:2x2x1
jax: 0.10.0
libtpu: 0.0.40
codegen_flags: <defaults>
</compile_context>

<pallas_src>
import functools

import jax
import jax.numpy as jnp
from jax.experimental import pallas as pl
from jax.experimental.pallas import tpu as pltpu


def _round_up(x, m):
    return ((x + m - 1) // m) * m


def _tgt_celebset_kernel(alpha_ref, z_ref, w1_ref, b1_ref, w2_ref, b2_ref, o_ref):
    # PReLU scalar (single shared parameter, torch default num_parameters=1),
    # hoisted once per grid step.
    a = alpha_ref[0, 0]

    # Linear 1: (TB, r_p) bf16 @ (r_p, h_p) bf16 -> f32 accum, bias in f32.
    h = jnp.dot(z_ref[...], w1_ref[...], preferred_element_type=jnp.float32)
    h = h + b1_ref[...]                      # (1, h_p) broadcasts over TB rows

    # PReLU in f32 (VPU filler under MXU/DMA).
    h = jnp.maximum(h, 0.0) + a * jnp.minimum(h, 0.0)

    # Linear 2: feed MXU at bf16 rate, accumulate in f32, bias in f32.
    out = jnp.dot(h.astype(jnp.bfloat16), w2_ref[...],
                  preferred_element_type=jnp.float32)
    o_ref[...] = out + b2_ref[...]           # (1, n_p) broadcasts over TB rows


@functools.partial(jax.jit, static_argnames=("tb",))
def tgt_celebset_forward(z, w1, b1, alpha, w2, b2, *, tb=256):
    """z: (B, r) f32; returns (B, nout) f32."""
    B, r = z.shape
    hidden = w1.shape[1]
    nout = w2.shape[1]

    # Lane-dense padding of feature dims; batch tiled in TB-row blocks.
    r_p = _round_up(r, 128)
    h_p = _round_up(hidden, 128)
    n_p = _round_up(nout, 128)
    TB = min(tb, _round_up(B, 8))
    B_p = _round_up(B, TB)

    # Zero-padding the contraction dims / bias tails is exact.
    zp = jnp.zeros((B_p, r_p), jnp.bfloat16).at[:B, :r].set(z.astype(jnp.bfloat16))
    w1p = jnp.zeros((r_p, h_p), jnp.bfloat16).at[:r, :hidden].set(w1.astype(jnp.bfloat16))
    b1p = jnp.zeros((1, h_p), jnp.float32).at[:, :hidden].set(b1.astype(jnp.float32))
    w2p = jnp.zeros((h_p, n_p), jnp.bfloat16).at[:hidden, :nout].set(w2.astype(jnp.bfloat16))
    b2p = jnp.zeros((1, n_p), jnp.float32).at[:, :nout].set(b2.astype(jnp.float32))
    alpha2 = jnp.reshape(alpha.astype(jnp.float32), (1, 1))

    grid = (B_p // TB,)

    flops = 2 * B_p * (r_p * h_p + h_p * n_p)
    bytes_accessed = (
        (B_p * r_p + r_p * h_p + h_p * n_p) * 2   # bf16 z, w1, w2
        + (h_p + n_p) * 4                         # f32 biases
        + B_p * n_p * 4                           # f32 output
    )

    out = pl.pallas_call(
        _tgt_celebset_kernel,
        out_shape=jax.ShapeDtypeStruct((B_p, n_p), jnp.float32),
        grid=grid,
        in_specs=[
            pl.BlockSpec(memory_space=pltpu.SMEM),        # alpha (1, 1), scalar
            pl.BlockSpec((TB, r_p), lambda i: (i, 0)),    # z tile streams over B
            pl.BlockSpec((r_p, h_p), lambda i: (0, 0)),   # W1 resident
            pl.BlockSpec((1, h_p), lambda i: (0, 0)),     # b1 resident
            pl.BlockSpec((h_p, n_p), lambda i: (0, 0)),   # W2 resident
            pl.BlockSpec((1, n_p), lambda i: (0, 0)),     # b2 resident
        ],
        out_specs=pl.BlockSpec((TB, n_p), lambda i: (i, 0)),
        compiler_params=pltpu.CompilerParams(
            dimension_semantics=("parallel",),            # 2 TCs on v7x
            vmem_limit_bytes=64 * 1024 * 1024,            # v7x-safe budget
        ),
        cost_estimate=pl.CostEstimate(
            flops=flops, bytes_accessed=bytes_accessed, transcendentals=0),
    )(alpha2, zp, w1p, b1p, w2p, b2p)

    return out[:B, :nout]


def init_params(key, r, hdl, nout):
    """Deterministic synthetic init matching the torch module's shapes."""
    hidden = 2 * hdl
    k1, k2, k3, k4 = jax.random.split(key, 4)
    # torch Linear default: U(-1/sqrt(fan_in), 1/sqrt(fan_in))
    lim1 = 1.0 / jnp.sqrt(r)
    lim2 = 1.0 / jnp.sqrt(hidden)
    w1 = jax.random.uniform(k1, (r, hidden), jnp.float32, -lim1, lim1)
    b1 = jax.random.uniform(k2, (1, hidden), jnp.float32, -lim1, lim1)
    w2 = jax.random.uniform(k3, (hidden, nout), jnp.float32, -lim2, lim2)
    b2 = jax.random.uniform(k4, (1, nout), jnp.float32, -lim2, lim2)
    alpha = jnp.array([0.25], dtype=jnp.float32)   # PReLU default init
    return w1, b1, alpha, w2, b2


def reference_forward_bf16(z, w1, b1, alpha, w2, b2):
    """Pure-JAX reference with the same bf16-input / f32-accumulate precision."""
    h = jnp.dot(z.astype(jnp.bfloat16), w1.astype(jnp.bfloat16),
                preferred_element_type=jnp.float32) + b1
    h = jnp.maximum(h, 0.0) + alpha[0] * jnp.minimum(h, 0.0)
    return jnp.dot(h.astype(jnp.bfloat16), w2.astype(jnp.bfloat16),
                   preferred_element_type=jnp.float32) + b2


def reference_forward_f32(z, w1, b1, alpha, w2, b2):
    h = z @ w1 + b1
    h = jnp.where(h >= 0, h, alpha[0] * h)
    return h @ w2 + b2


if __name__ == "__main__":
    # Small shapes consistent with the module: Linear(r, 2*hdl) -> PReLU -> Linear(2*hdl, nout)
    B, r, hdl, nout = 8, 16, 32, 8

    key = jax.random.PRNGKey(0)
    kz, kp = jax.random.split(key)
    z = jax.random.normal(kz, (B, r), dtype=jnp.float32)
    w1, b1, alpha, w2, b2 = init_params(kp, r, hdl, nout)

    out = tgt_celebset_forward(z, w1, b1, alpha, w2, b2)
    out = jax.block_until_ready(out)
    assert out.shape == (B, nout)

    # Tight check against a precision-matched (bf16 in / f32 accum) reference.
    ref_bf16 = reference_forward_bf16(z, w1, b1, alpha, w2, b2)
    assert jnp.allclose(out, ref_bf16, atol=1e-3, rtol=1e-3)

    # Loose sanity check against the full-f32 reference.
    ref_f32 = reference_forward_f32(z, w1, b1, alpha, w2, b2)
    assert jnp.allclose(out, ref_f32, atol=5e-2, rtol=5e-2)

    print("KERNEL_OK")
</pallas_src>

<mosaic_0001>
module attributes {stable_mosaic.version = 11 : i64} {
  func.func @_tgt_celebset_kernel(%arg0: i32, %arg1: memref<1x1xf32, #tpu.memory_space<smem>>, %arg2: memref<8x128xbf16, #tpu.memory_space<vmem>>, %arg3: memref<128x128xbf16, #tpu.memory_space<vmem>>, %arg4: memref<1x128xf32, #tpu.memory_space<vmem>>, %arg5: memref<128x128xbf16, #tpu.memory_space<vmem>>, %arg6: memref<1x128xf32, #tpu.memory_space<vmem>>, %arg7: memref<8x128xf32, #tpu.memory_space<vmem>>) attributes {dimension_semantics = [#tpu.dimension_semantics<parallel>], iteration_bounds = array<i64: 1>, scalar_prefetch = 0 : i64, scratch_operands = 0 : i64, tpu.core_type = #tpu.core_type<tc>, window_params = [{transform_indices = @transform_0, window_bounds = array<i64: 1, 1>}, {transform_indices = @transform_1, window_bounds = array<i64: 8, 128>}, {pipeline_mode = #tpu.pipeline_mode<synchronous>, transform_indices = @transform_2, window_bounds = array<i64: 128, 128>}, {pipeline_mode = #tpu.pipeline_mode<synchronous>, transform_indices = @transform_3, window_bounds = array<i64: 1, 128>}, {pipeline_mode = #tpu.pipeline_mode<synchronous>, transform_indices = @transform_4, window_bounds = array<i64: 128, 128>}, {pipeline_mode = #tpu.pipeline_mode<synchronous>, transform_indices = @transform_5, window_bounds = array<i64: 1, 128>}, {transform_indices = @transform_6, window_bounds = array<i64: 8, 128>}]} {
    %c0 = arith.constant 0 : index
    %c0_0 = arith.constant 0 : index
    %0 = memref.load %arg1[%c0, %c0_0] : memref<1x1xf32, #tpu.memory_space<smem>>
    %c0_1 = arith.constant 0 : index
    %c0_2 = arith.constant 0 : index
    %1 = vector.load %arg2[%c0_1, %c0_2] : memref<8x128xbf16, #tpu.memory_space<vmem>>, vector<8x128xbf16>
    %c0_3 = arith.constant 0 : index
    %c0_4 = arith.constant 0 : index
    %2 = vector.load %arg3[%c0_3, %c0_4] : memref<128x128xbf16, #tpu.memory_space<vmem>>, vector<128x128xbf16>
    %cst = arith.constant dense<0.000000e+00> : vector<8x128xf32>
    %3 = tpu.matmul %1, %2, %cst {dimension_numbers = #tpu.dot_dimension_numbers<[1], [0], [0], [1], [0, 0, 1, 1], [], []>} : vector<8x128xbf16>, vector<128x128xbf16>, vector<8x128xf32> -> vector<8x128xf32>
    %c0_5 = arith.constant 0 : index
    %c0_6 = arith.constant 0 : index
    %4 = vector.load %arg4[%c0_5, %c0_6] : memref<1x128xf32, #tpu.memory_space<vmem>>, vector<1x128xf32>
    %5 = vector.broadcast %4 : vector<1x128xf32> to vector<8x128xf32>
    %6 = arith.addf %3, %5 : vector<8x128xf32>
    %cst_7 = arith.constant 0.000000e+00 : f32
    %7 = vector.broadcast %cst_7 : f32 to vector<8x128xf32>
    %8 = arith.maximumf %6, %7 : vector<8x128xf32>
    %cst_8 = arith.constant 0.000000e+00 : f32
    %9 = vector.broadcast %cst_8 : f32 to vector<8x128xf32>
    %10 = arith.minimumf %6, %9 : vector<8x128xf32>
    %11 = vector.broadcast %0 : f32 to vector<8x128xf32>
    %12 = arith.mulf %11, %10 : vector<8x128xf32>
    %13 = arith.addf %8, %12 : vector<8x128xf32>
    %14 = arith.truncf %13 : vector<8x128xf32> to vector<8x128xbf16>
    %c0_9 = arith.constant 0 : index
    %c0_10 = arith.constant 0 : index
    %15 = vector.load %arg5[%c0_9, %c0_10] : memref<128x128xbf16, #tpu.memory_space<vmem>>, vector<128x128xbf16>
    %cst_11 = arith.constant dense<0.000000e+00> : vector<8x128xf32>
    %16 = tpu.matmul %14, %15, %cst_11 {dimension_numbers = #tpu.dot_dimension_numbers<[1], [0], [0], [1], [0, 0, 1, 1], [], []>} : vector<8x128xbf16>, vector<128x128xbf16>, vector<8x128xf32> -> vector<8x128xf32>
    %c0_12 = arith.constant 0 : index
    %c0_13 = arith.constant 0 : index
    %17 = vector.load %arg6[%c0_12, %c0_13] : memref<1x128xf32, #tpu.memory_space<vmem>>, vector<1x128xf32>
    %18 = vector.broadcast %17 : vector<1x128xf32> to vector<8x128xf32>
    %19 = arith.addf %16, %18 : vector<8x128xf32>
    %c0_14 = arith.constant 0 : index
    %c0_15 = arith.constant 0 : index
    %20 = vector.load %arg7[%c0_14, %c0_15] : memref<8x128xf32, #tpu.memory_space<vmem>>, vector<8x128xf32>
    tpu.vector_store %arg7[%c0_14, %c0_15], %19 {strides = array<i32>} : memref<8x128xf32, #tpu.memory_space<vmem>>, vector<8x128xf32>,
    return
  }
  func.func @transform_0(%arg0: i32) -> (i32, i32) {
    %c0_i32 = arith.constant 0 : i32
    %c0_i32_0 = arith.constant 0 : i32
    %c0_i32_1 = arith.constant 0 : i32
    return %c0_i32, %c0_i32_0 : i32, i32
  }
  func.func @transform_1(%arg0: i32) -> (i32, i32) {
    %c0_i32 = arith.constant 0 : i32
    %c0_i32_0 = arith.constant 0 : i32
    return %arg0, %c0_i32 : i32, i32
  }
  func.func @transform_2(%arg0: i32) -> (i32, i32) {
    %c0_i32 = arith.constant 0 : i32
    %c0_i32_0 = arith.constant 0 : i32
    %c0_i32_1 = arith.constant 0 : i32
    return %c0_i32, %c0_i32_0 : i32, i32
  }
  func.func @transform_3(%arg0: i32) -> (i32, i32) {
    %c0_i32 = arith.constant 0 : i32
    %c0_i32_0 = arith.constant 0 : i32
    %c0_i32_1 = arith.constant 0 : i32
    return %c0_i32, %c0_i32_0 : i32, i32
  }
  func.func @transform_4(%arg0: i32) -> (i32, i32) {
    %c0_i32 = arith.constant 0 : i32
    %c0_i32_0 = arith.constant 0 : i32
    %c0_i32_1 = arith.constant 0 : i32
    return %c0_i32, %c0_i32_0 : i32, i32
  }
  func.func @transform_5(%arg0: i32) -> (i32, i32) {
    %c0_i32 = arith.constant 0 : i32
    %c0_i32_0 = arith.constant 0 : i32
    %c0_i32_1 = arith.constant 0 : i32
    return %c0_i32, %c0_i32_0 : i32, i32
  }
  func.func @transform_6(%arg0: i32) -> (i32, i32) {
    %c0_i32 = arith.constant 0 : i32
    %c0_i32_0 = arith.constant 0 : i32
    return %arg0, %c0_i32 : i32, i32
  }
}

</mosaic_0001>

<llo_original>
// kernel: tgt_celebset_forward.1
$region0: #{tgt_celebset_forward.1}
  #allocation0 [shape = 'u32[]', space=smem, size = 0x4, offset = 0x4, fixed_abs, tag = 'smem constant byte address 0x4 - core index']
  #allocation1 [shape = 'u32[144,128]{1,0:T(1,128)}', space=vmem, size = 0x12000, scoped, tag = 'internal scratch']
  #allocation2 [shape = 'f32[1,1]{1,0:T(1,128)S(6)}', space=smem, size = 0x200, scoped, tag = 'scoped memory for tgt_celebset_forward.1']
  %s0 = inlined_call_operand.<no memory space> [shape: f32[1,1], index: 0, kind: input, shape index: {}]
  %s1 = inlined_call_operand.vmem [shape: bf16[8,128], index: 1, kind: input, shape index: {}]
  %s2 = inlined_call_operand.vmem [shape: bf16[128,128], index: 2, kind: input, shape index: {}]
  %s3 = inlined_call_operand.vmem [shape: f32[1,128], index: 3, kind: input, shape index: {}]
  %s4 = inlined_call_operand.vmem [shape: bf16[128,128], index: 4, kind: input, shape index: {}]
  %s5 = inlined_call_operand.vmem [shape: f32[1,128], index: 5, kind: input, shape index: {}]
  %s6 = inlined_call_operand.hbm [shape: f32[8,128], index: 6, kind: output, shape index: {}]
  %s7 = sld [smem:[#allocation0]]
  $region34: #{tgt_celebset_forward.1} parent=0
    _
  %s9 = ssub.s32 1, %s7
  %s10 = scalar_select 0, %s9, %s7
  %11 = sst [smem:[#allocation2]] %s0
  $region1: #{tgt_celebset_forward.1} parent=0
    #allocation3 [shape = 'u8[4096]{0}', space=vmem, size = 0x1000, scoped, tag = 'output window, operand 0, single buffered']
    #allocation4 [shape = 's32[1]{0}', space=sflag, size = 0x4, scoped, tag = 'scoped memory for tgt_celebset_forward.1']
    %12 = vsyncpa [#allocation4], 0
    // Predicated region
    $region2: #{tgt_celebset_forward.1} parent=1 // pred_check
      _
    $region3: #{tgt_celebset_forward.1} parent=1 // pred_check_branch
      %14 = sbr.rel (0) target = $region5
    $region4: #{tgt_celebset_forward.1} parent=1 // pred_region
      _
    $region5: #{tgt_celebset_forward.1} parent=1 // pred_fallthru
      _
    // Predicated region
    $region6: #{tgt_celebset_forward.1} parent=1 // pred_check
      _
    $region7: #{tgt_celebset_forward.1} parent=1 // pred_check_branch
      %16 = sbr.rel (0) target = $region9
    $region8: #{tgt_celebset_forward.1} parent=1 // pred_region
      _
    $region9: #{tgt_celebset_forward.1} parent=1 // pred_fallthru
      _
    // Predicated region
    $region10: #{tgt_celebset_forward.1} parent=1 // pred_check
      _
    $region11: #{tgt_celebset_forward.1} parent=1 // pred_check_branch
      %18 = sbr.rel (0) target = $region13
    $region12: #{tgt_celebset_forward.1} parent=1 // pred_region
      _
    $region13: #{tgt_celebset_forward.1} parent=1 // pred_fallthru
      _
    // Predicated region
    $region14: #{tgt_celebset_forward.1} parent=1 // pred_check
      _
    $region15: #{tgt_celebset_forward.1} parent=1 // pred_check_branch
      %20 = sbr.rel (0) target = $region17
    $region16: #{tgt_celebset_forward.1} parent=1 // pred_region
      _
    $region17: #{tgt_celebset_forward.1} parent=1 // pred_fallthru
      _
    // Predicated region
    $region18: #{tgt_celebset_forward.1} parent=1 // pred_check
      _
    $region19: #{tgt_celebset_forward.1} parent=1 // pred_check_branch
      %22 = sbr.rel (0) target = $region21
    $region20: #{tgt_celebset_forward.1} parent=1 // pred_region
      _
    $region21: #{tgt_celebset_forward.1} parent=1 // pred_fallthru
      _
    // Predicated region
    $region22: #{tgt_celebset_forward.1} parent=1 // pred_check
      _
    $region23: #{tgt_celebset_forward.1} parent=1 // pred_check_branch
      %24 = sbr.rel (0) target = $region25
    $region24: #{tgt_celebset_forward.1} parent=1 // pred_region
      _
    $region25: #{tgt_celebset_forward.1} parent=1 // pred_fallthru
      _
    %s26 = sld [smem:[#allocation2]]
    %v27 = vld [vmem:[%s1] sm:$0xf]
    %v28 = vld [vmem:[%s2] sm:$0xf]
    %v29 = vld [vmem:[%s2 + $0x4] sm:$0xf]
    %v30 = vld [vmem:[%s2 + $0x8] sm:$0xf]
    %v31 = vld [vmem:[%s2 + $0xc] sm:$0xf]
    %v32 = vld [vmem:[%s2 + $0x10] sm:$0xf]
    %v33 = vld [vmem:[%s2 + $0x14] sm:$0xf]
    %v34 = vld [vmem:[%s2 + $0x18] sm:$0xf]
    %v35 = vld [vmem:[%s2 + $0x1c] sm:$0xf]
    %v36 = vld [vmem:[%s2 + $0x20] sm:$0xf]
    %v37 = vld [vmem:[%s2 + $0x24] sm:$0xf]
    %v38 = vld [vmem:[%s2 + $0x28] sm:$0xf]
    %v39 = vld [vmem:[%s2 + $0x2c] sm:$0xf]
    %v40 = vld [vmem:[%s2 + $0x30] sm:$0xf]
    %v41 = vld [vmem:[%s2 + $0x34] sm:$0xf]
    %v42 = vld [vmem:[%s2 + $0x38] sm:$0xf]
    %v43 = vld [vmem:[%s2 + $0x3c] sm:$0xf]
    %v44 = vld [vmem:[%s3] sm:$0x1]
    %v46 = vlaneseq
    %v47 = vshrl.u32 %v46, 7
    %v48 = vsub.s32 0, %v47
    %v49 = vrot.slane %v44, %v48
    %v67 = vunpack.c.l.b16 %v28
    %v68 = vunpack.c.l.b16 %v29
    %v69 = vunpack.c.l.b16 %v30
    %v70 = vunpack.c.l.b16 %v31
    %v71 = vunpack.c.l.b16 %v32
    %v72 = vunpack.c.l.b16 %v33
    %v73 = vunpack.c.l.b16 %v34
    %v74 = vunpack.c.l.b16 %v35
    %v75 = vunpack.c.l.b16 %v36
    %v76 = vunpack.c.l.b16 %v37
    %v77 = vunpack.c.l.b16 %v38
    %v78 = vunpack.c.l.b16 %v39
    %v79 = vunpack.c.l.b16 %v40
    %v80 = vunpack.c.l.b16 %v41
    %v81 = vunpack.c.l.b16 %v42
    %v82 = vunpack.c.l.b16 %v43
    %v83 = vpack.c.b16 %v68, %v67
    %v84 = vpack.c.b16 %v70, %v69
    %v85 = vpack.c.b16 %v72, %v71
    %v86 = vpack.c.b16 %v74, %v73
    %v87 = vpack.c.b16 %v76, %v75
    %v88 = vpack.c.b16 %v78, %v77
    %v89 = vpack.c.b16 %v80, %v79
    %v90 = vpack.c.b16 %v82, %v81
    %99 = vmatprep.subr.bf16.mxu0 0
    %100 = vmatpush1.bf16.msra.mxu0 %v90
    %101 = vmatprep.subr.bf16.mxu0 0
    %102 = vmatpush1.bf16.msra.mxu0 %v89
    %103 = vmatprep.subr.bf16.mxu0 0
    %104 = vmatpush1.bf16.msra.mxu0 %v88
    %105 = vmatprep.subr.bf16.mxu0 0
    %106 = vmatpush1.bf16.msra.mxu0 %v87
    %107 = vmatprep.subr.bf16.mxu0 0
    %108 = vmatpush1.bf16.msra.mxu0 %v86
    %109 = vmatprep.subr.bf16.mxu0 0
    %110 = vmatpush1.bf16.msra.mxu0 %v85
    %111 = vmatprep.subr.bf16.mxu0 0
    %112 = vmatpush1.bf16.msra.mxu0 %v84
    %113 = vmatprep.subr.bf16.mxu0 0
    %114 = vmatpush1.bf16.msra.mxu0 %v83
    %115 = vmatprep.subr.bf16.mxu0 0
    %116 = vmatpush2.bf16.msra.mxu0 0
    %117 = vmatprep.subr.bf16.mxu0 0
    %118 = vmatpush2.bf16.msra.mxu0 0
    %119 = vmatprep.subr.bf16.mxu0 0
    %120 = vmatpush2.bf16.msra.mxu0 0
    %121 = vmatprep.subr.bf16.mxu0 0
    %122 = vmatpush2.bf16.msra.mxu0 0
    %123 = vmatprep.subr.bf16.mxu0 0
    %124 = vmatpush2.bf16.msra.mxu0 0
    %125 = vmatprep.subr.bf16.mxu0 0
    %126 = vmatpush2.bf16.msra.mxu0 0
    %127 = vmatprep.subr.bf16.mxu0 0
    %128 = vmatpush2.bf16.msra.mxu0 0
    %129 = vmatprep.subr.bf16.mxu0 0
    %130 = vmatpush2.bf16.msra.mxu0 0
    %131 = vmatprep.mubr.bf16.mxu0 0
    %132 = vmatmul.mubr.bf16.gmra.mxu0 %v27
    %v133 = vpop.f32.mrf.mxu0
    %v134 = vadd.f32 %v49, %v133
    %v135 = vpop.f32.mrf.mxu0
    %v136 = vpop.f32.mrf.mxu0
    %v137 = vpop.f32.mrf.mxu0
    %138 = vdwg.mxu0
    %v139 = vmax.f32 %v134, 0.0
    %v140 = vmin.f32 %v134, 0.0
    %v141 = vstv %s26
    %v142 = vmul.f32 %v141, %v140
    %v143 = vadd.f32 %v139, %v142
    %v144 = vpack.c.bf16 %v143, %v143
    %v145 = vld [vmem:[%s4] sm:$0xf]
    %v146 = vld [vmem:[%s4 + $0x4] sm:$0xf]
    %v147 = vld [vmem:[%s4 + $0x8] sm:$0xf]
    %v148 = vld [vmem:[%s4 + $0xc] sm:$0xf]
    %v149 = vld [vmem:[%s4 + $0x10] sm:$0xf]
    %v150 = vld [vmem:[%s4 + $0x14] sm:$0xf]
    %v151 = vld [vmem:[%s4 + $0x18] sm:$0xf]
    %v152 = vld [vmem:[%s4 + $0x1c] sm:$0xf]
    %v153 = vld [vmem:[%s4 + $0x20] sm:$0xf]
    %v154 = vld [vmem:[%s4 + $0x24] sm:$0xf]
    %v155 = vld [vmem:[%s4 + $0x28] sm:$0xf]
    %v156 = vld [vmem:[%s4 + $0x2c] sm:$0xf]
    %v157 = vld [vmem:[%s4 + $0x30] sm:$0xf]
    %v158 = vld [vmem:[%s4 + $0x34] sm:$0xf]
    %v159 = vld [vmem:[%s4 + $0x38] sm:$0xf]
    %v160 = vld [vmem:[%s4 + $0x3c] sm:$0xf]
    %v161 = vld [vmem:[%s5] sm:$0x1]
    %v163 = vlaneseq
    %v164 = vshrl.u32 %v163, 7
    %v165 = vsub.s32 0, %v164
    %v166 = vrot.slane %v161, %v165
    %v184 = vunpack.c.l.b16 %v145
    %v185 = vunpack.c.l.b16 %v146
    %v186 = vunpack.c.l.b16 %v147
    %v187 = vunpack.c.l.b16 %v148
    %v188 = vunpack.c.l.b16 %v149
    %v189 = vunpack.c.l.b16 %v150
    %v190 = vunpack.c.l.b16 %v151
    %v191 = vunpack.c.l.b16 %v152
    %v192 = vunpack.c.l.b16 %v153
    %v193 = vunpack.c.l.b16 %v154
    %v194 = vunpack.c.l.b16 %v155
    %v195 = vunpack.c.l.b16 %v156
    %v196 = vunpack.c.l.b16 %v157
    %v197 = vunpack.c.l.b16 %v158
    %v198 = vunpack.c.l.b16 %v159
    %v199 = vunpack.c.l.b16 %v160
    %v200 = vpack.c.b16 %v185, %v184
    %v201 = vpack.c.b16 %v187, %v186
    %v202 = vpack.c.b16 %v189, %v188
    %v203 = vpack.c.b16 %v191, %v190
    %v204 = vpack.c.b16 %v193, %v192
    %v205 = vpack.c.b16 %v195, %v194
    %v206 = vpack.c.b16 %v197, %v196
    %v207 = vpack.c.b16 %v199, %v198
    %216 = vmatprep.subr.bf16.mxu0 0
    %217 = vmatpush1.bf16.msra.mxu0 %v207
    %218 = vmatprep.subr.bf16.mxu0 0
    %219 = vmatpush1.bf16.msra.mxu0 %v206
    %220 = vmatprep.subr.bf16.mxu0 0
    %221 = vmatpush1.bf16.msra.mxu0 %v205
    %222 = vmatprep.subr.bf16.mxu0 0
    %223 = vmatpush1.bf16.msra.mxu0 %v204
    %224 = vmatprep.subr.bf16.mxu0 0
    %225 = vmatpush1.bf16.msra.mxu0 %v203
    %226 = vmatprep.subr.bf16.mxu0 0
    %227 = vmatpush1.bf16.msra.mxu0 %v202
    %228 = vmatprep.subr.bf16.mxu0 0
    %229 = vmatpush1.bf16.msra.mxu0 %v201
    %230 = vmatprep.subr.bf16.mxu0 0
    %231 = vmatpush1.bf16.msra.mxu0 %v200
    %232 = vmatprep.subr.bf16.mxu0 0
    %233 = vmatpush2.bf16.msra.mxu0 0
    %234 = vmatprep.subr.bf16.mxu0 0
    %235 = vmatpush2.bf16.msra.mxu0 0
    %236 = vmatprep.subr.bf16.mxu0 0
    %237 = vmatpush2.bf16.msra.mxu0 0
    %238 = vmatprep.subr.bf16.mxu0 0
    %239 = vmatpush2.bf16.msra.mxu0 0
    %240 = vmatprep.subr.bf16.mxu0 0
    %241 = vmatpush2.bf16.msra.mxu0 0
    %242 = vmatprep.subr.bf16.mxu0 0
    %243 = vmatpush2.bf16.msra.mxu0 0
    %244 = vmatprep.subr.bf16.mxu0 0
    %245 = vmatpush2.bf16.msra.mxu0 0
    %246 = vmatprep.subr.bf16.mxu0 0
    %247 = vmatpush2.bf16.msra.mxu0 0
    %248 = vmatprep.mubr.bf16.mxu0 0
    %249 = vmatmul.mubr.bf16.gmra.mxu0 %v144
    %v250 = vpop.f32.mrf.mxu0
    %v251 = vadd.f32 %v166, %v250
    %v252 = vpop.f32.mrf.mxu0
    %v253 = vpop.f32.mrf.mxu0
    %v254 = vpop.f32.mrf.mxu0
    %255 = vdwg.mxu0
    %256 = vst [vmem:[#allocation3] sm:$0xff] %v251
    // Predicated region
    $region26: #{tgt_celebset_forward.1} parent=1 // pred_check
      _
    $region27: #{tgt_celebset_forward.1} parent=1 // pred_check_branch
      %258 = sbr.rel (0) target = $region29
    $region28: #{tgt_celebset_forward.1} parent=1 // pred_region
      %s260 = ssub.s32 128, 128
      %261 = vsyncadd [#allocation4], %s260
      %s263 = sshll.u32 [#allocation3], 4
      %s264 = int_to_ptr.vmem [resolvable:$true] %s263
      %266 = dma.vmem_to_hbm [thread:$0]  %s264, 128, %s6, [#allocation4]
    $region29: #{tgt_celebset_forward.1} parent=1 // pred_fallthru
      _
    // Predicated region
    $region30: #{tgt_celebset_forward.1} parent=1 // pred_check
      _
    $region31: #{tgt_celebset_forward.1} parent=1 // pred_check_branch
      %268 = sbr.rel (0) target = $region33
    $region32: #{tgt_celebset_forward.1} parent=1 // pred_region
      %269 = dma.done [#allocation4], 128
    $region33: #{tgt_celebset_forward.1} parent=1 // pred_fallthru
      _
    %270 = vsyncpa [#allocation4], 1

</llo_original>
